<compile_context>
chip_gen: v7x
topology: tpu7x:2x2x1
jax: 0.10.0
libtpu: 0.0.40
codegen_flags: <defaults>
</compile_context>

<pallas_src>
import functools

import jax
import jax.numpy as jnp
import numpy as np
from jax.experimental import pallas as pl
from jax.experimental.pallas import tpu as pltpu


def _batch_loss_kernel(w_ref, close_ref, out_ref, *,
                       commission_ratio, interest_rate):
    w = w_ref[...]                       # [B, A+1]  portfolio weights
    close = close_ref[...]               # [B, A]    close-price relatives
    B = w.shape[0]

    w_cash = w[:, 0:1]                   # [B, 1]  cash column (price relative == 1)
    w_assets = w[:, 1:]                  # [B, A]  asset columns

    # element_reward = w * cp ; cash element is just w_cash.
    elem_assets = w_assets * close                                     # [B, A]
    reward = w_cash + jnp.sum(elem_assets, axis=1, keepdims=True)      # [B, 1] == matmul(w, cp)

    # interest: only negative element rewards contribute.
    interest = (jnp.minimum(w_cash, 0.0)
                + jnp.sum(jnp.minimum(elem_assets, 0.0), axis=1, keepdims=True)
                ) * interest_rate                                      # [B, 1]

    # future omega and transaction-cost factor.
    inv_r = 1.0 / reward                                               # [B, 1]
    fo_cash = w_cash * inv_r                                           # [B, 1]
    fo_assets = elem_assets * inv_r                                    # [B, A]

    # Row b needs future_omega[b - 1]; roll along the sublane (batch) axis.
    # Row 0 wraps in future_omega[B-1], but that row is masked to pure_pc = 1
    # below, so the wrap-around value never matters.  (Do NOT "fix" the roll.)
    foc_prev = pltpu.roll(fo_cash, shift=1, axis=0)
    foa_prev = pltpu.roll(fo_assets, shift=1, axis=0)
    cost = (jnp.abs(foc_prev - w_cash)
            + jnp.sum(jnp.abs(foa_prev - w_assets), axis=1, keepdims=True))  # [B, 1]
    row = jax.lax.broadcasted_iota(jnp.int32, cost.shape, 0)
    pure_pc = jnp.where(row == 0, 1.0, 1.0 - cost * commission_ratio)  # [B, 1]

    reward = reward * pure_pc + interest                               # [B, 1]

    # loss = mean(-log(reward)) ; portfolio value = prod(reward) = exp(sum(log)).
    # Reusing the log avoids the serial sublane-extract product chain.
    log_r = jnp.log(reward)                                            # [B, 1]
    sum_log = jnp.sum(log_r, axis=0, keepdims=True)                    # [1, 1]
    loss = -sum_log * (1.0 / float(B))                                 # [1, 1]
    pv = jnp.exp(sum_log)                                              # [1, 1]

    out_ref[:, 0:1] = loss
    out_ref[:, 1:2] = pv


def batch_loss(w, y, commission_ratio, interest_rate):
    """w: [B, 1, A+1], y: [B, A, F] (feature 0 = close-price relative)."""
    B, _, A1 = w.shape
    w2 = jnp.asarray(w, jnp.float32).reshape(B, A1)        # [B, A+1] (pure reshape)
    close = jnp.asarray(y[:, :, 0], jnp.float32)           # [B, A]   (single slice)

    kernel = functools.partial(_batch_loss_kernel,
                               commission_ratio=float(commission_ratio),
                               interest_rate=float(interest_rate))

    out = pl.pallas_call(
        kernel,
        out_shape=jax.ShapeDtypeStruct((1, 2), jnp.float32),
        in_specs=[pl.BlockSpec(memory_space=pltpu.MemorySpace.VMEM),
                  pl.BlockSpec(memory_space=pltpu.MemorySpace.VMEM)],
        out_specs=pl.BlockSpec(memory_space=pltpu.MemorySpace.VMEM),
    )(w2, close)
    return out[0, 0], out[0, 1]


def batch_loss_ref(w, y, commission_ratio, interest_rate):
    """Pure-JAX transcription of the PyTorch forward, for verification."""
    B = w.shape[0]
    cp = jnp.concatenate([jnp.ones((B, 1, 1), jnp.float32), y[:, :, 0:1]], 1)  # [B,A+1,1]
    reward = jnp.matmul(w, cp)                                                  # [B,1,1]
    cp2 = cp.reshape(B, 1, -1)
    elem = w * cp2
    interest = jnp.sum(jnp.where(elem < 0, elem, 0.0), axis=2,
                       keepdims=True) * interest_rate
    fo = elem / reward
    wt, wt1 = fo[:-1], w[1:]
    pure_pc = 1.0 - jnp.sum(jnp.abs(wt - wt1), -1) * commission_ratio           # [B-1,1]
    pure_pc = jnp.concatenate([jnp.ones((1, 1), jnp.float32), pure_pc], 0)
    pure_pc = pure_pc.reshape(B, 1, 1)
    reward = reward * pure_pc + interest
    portfolio_value = jnp.prod(reward, axis=0)
    loss = jnp.mean(-jnp.log(reward))
    return loss, portfolio_value[0, 0]


if __name__ == "__main__":
    # Module hyper-parameters (gamma/beta are unused in forward).
    commission_ratio = 0.0025
    interest_rate = 0.02 / 250.0

    # Small deterministic inputs consistent with the forward pass:
    #   w: [B, 1, A+1]  (softmax weights over cash + A assets)
    #   y: [B, A, F]    (price relatives; feature 0 is the close relative)
    B, A, F = 8, 11, 4
    key = jax.random.PRNGKey(0)
    k1, k2 = jax.random.split(key)
    w = jax.nn.softmax(jax.random.normal(k1, (B, 1, A + 1), jnp.float32), axis=-1)
    y = 1.0 + 0.02 * jax.random.normal(k2, (B, A, F), jnp.float32)

    fn = jax.jit(functools.partial(batch_loss,
                                   commission_ratio=commission_ratio,
                                   interest_rate=interest_rate))
    loss, pv = fn(w, y)
    jax.block_until_ready((loss, pv))

    loss_r, pv_r = batch_loss_ref(w, y, commission_ratio, interest_rate)
    assert np.allclose(np.asarray(loss), np.asarray(loss_r), rtol=1e-5, atol=1e-6), (loss, loss_r)
    assert np.allclose(np.asarray(pv), np.asarray(pv_r), rtol=1e-5, atol=1e-6), (pv, pv_r)

    print("KERNEL_OK")
</pallas_src>

<mosaic_0001>
module attributes {stable_mosaic.version = 11 : i64} {
  func.func @_batch_loss_kernel(%arg0: memref<8x12xf32, #tpu.memory_space<vmem>>, %arg1: memref<8x11xf32, #tpu.memory_space<vmem>>, %arg2: memref<1x2xf32, #tpu.memory_space<vmem>>) attributes {dimension_semantics = [], scalar_prefetch = 0 : i64, scratch_operands = 0 : i64, tpu.core_type = #tpu.core_type<tc>} {
    %c0 = arith.constant 0 : index
    %c0_0 = arith.constant 0 : index
    %0 = vector.load %arg0[%c0, %c0_0] : memref<8x12xf32, #tpu.memory_space<vmem>>, vector<8x12xf32>
    %c0_1 = arith.constant 0 : index
    %c0_2 = arith.constant 0 : index
    %1 = vector.load %arg1[%c0_1, %c0_2] : memref<8x11xf32, #tpu.memory_space<vmem>>, vector<8x11xf32>
    %2 = vector.extract_strided_slice %0 {offsets = [0, 0], sizes = [8, 1], strides = [1, 1]} : vector<8x12xf32> to vector<8x1xf32>
    %3 = vector.extract_strided_slice %0 {offsets = [0, 1], sizes = [8, 11], strides = [1, 1]} : vector<8x12xf32> to vector<8x11xf32>
    %4 = arith.mulf %3, %1 : vector<8x11xf32>
    %cst = arith.constant dense<0.000000e+00> : vector<8xf32>
    %5 = vector.multi_reduction <add>, %4, %cst [1] : vector<8x11xf32> to vector<8xf32>
    %6 = vector.shape_cast %5 : vector<8xf32> to vector<8x1xf32>
    %7 = arith.addf %2, %6 : vector<8x1xf32>
    %cst_3 = arith.constant 0.000000e+00 : f32
    %8 = vector.broadcast %cst_3 : f32 to vector<8x1xf32>
    %9 = arith.minimumf %2, %8 : vector<8x1xf32>
    %cst_4 = arith.constant 0.000000e+00 : f32
    %10 = vector.broadcast %cst_4 : f32 to vector<8x11xf32>
    %11 = arith.minimumf %4, %10 : vector<8x11xf32>
    %cst_5 = arith.constant dense<0.000000e+00> : vector<8xf32>
    %12 = vector.multi_reduction <add>, %11, %cst_5 [1] : vector<8x11xf32> to vector<8xf32>
    %13 = vector.shape_cast %12 : vector<8xf32> to vector<8x1xf32>
    %14 = arith.addf %9, %13 : vector<8x1xf32>
    %cst_6 = arith.constant 8.000000e-05 : f32
    %15 = vector.broadcast %cst_6 : f32 to vector<8x1xf32>
    %16 = arith.mulf %14, %15 : vector<8x1xf32>
    %cst_7 = arith.constant 1.000000e+00 : f32
    %17 = vector.broadcast %cst_7 : f32 to vector<8x1xf32>
    %18 = arith.divf %17, %7 : vector<8x1xf32>
    %19 = arith.mulf %2, %18 : vector<8x1xf32>
    %20 = vector.broadcast %18 : vector<8x1xf32> to vector<8x11xf32>
    %21 = arith.mulf %4, %20 : vector<8x11xf32>
    %c1_i32 = arith.constant 1 : i32
    %22 = tpu.dynamic_rotate %19 by %c1_i32 dim 0 : vector<8x1xf32>, i32 -> vector<8x1xf32>
    %c1_i32_8 = arith.constant 1 : i32
    %23 = tpu.dynamic_rotate %21 by %c1_i32_8 dim 0 : vector<8x11xf32>, i32 -> vector<8x11xf32>
    %24 = arith.subf %22, %2 : vector<8x1xf32>
    %25 = math.absf %24 : vector<8x1xf32>
    %26 = arith.subf %23, %3 : vector<8x11xf32>
    %27 = math.absf %26 : vector<8x11xf32>
    %cst_9 = arith.constant dense<0.000000e+00> : vector<8xf32>
    %28 = vector.multi_reduction <add>, %27, %cst_9 [1] : vector<8x11xf32> to vector<8xf32>
    %29 = vector.shape_cast %28 : vector<8xf32> to vector<8x1xf32>
    %30 = arith.addf %25, %29 : vector<8x1xf32>
    %31 = tpu.iota {dimensions = array<i32: 0>} : vector<8x1xi32>
    %c0_i32 = arith.constant 0 : i32
    %32 = vector.broadcast %c0_i32 : i32 to vector<8x1xi32>
    %33 = arith.cmpi eq, %31, %32 : vector<8x1xi32>
    %cst_10 = arith.constant 2.500000e-03 : f32
    %34 = vector.broadcast %cst_10 : f32 to vector<8x1xf32>
    %35 = arith.mulf %30, %34 : vector<8x1xf32>
    %cst_11 = arith.constant 1.000000e+00 : f32
    %36 = vector.broadcast %cst_11 : f32 to vector<8x1xf32>
    %37 = arith.subf %36, %35 : vector<8x1xf32>
    %cst_12 = arith.constant 1.000000e+00 : f32
    %38 = vector.broadcast %cst_12 : f32 to vector<8x1xf32>
    %39 = arith.select %33, %38, %37 : vector<8x1xi1>, vector<8x1xf32>
    %40 = arith.mulf %7, %39 : vector<8x1xf32>
    %41 = arith.addf %40, %16 : vector<8x1xf32>
    %42 = math.log %41 : vector<8x1xf32>
    %cst_13 = arith.constant dense<0.000000e+00> : vector<1xf32>
    %43 = vector.multi_reduction <add>, %42, %cst_13 [0] : vector<8x1xf32> to vector<1xf32>
    %44 = vector.shape_cast %43 : vector<1xf32> to vector<1x1xf32>
    %cst_14 = arith.constant 0.000000e+00 : f32
    %45 = vector.broadcast %cst_14 : f32 to vector<1x1xf32>
    %46 = arith.subf %45, %44 : vector<1x1xf32>
    %cst_15 = arith.constant 1.250000e-01 : f32
    %47 = vector.broadcast %cst_15 : f32 to vector<1x1xf32>
    %48 = arith.mulf %46, %47 : vector<1x1xf32>
    %49 = math.exp %44 : vector<1x1xf32>
    %c0_16 = arith.constant 0 : index
    %c0_17 = arith.constant 0 : index
    %50 = vector.load %arg2[%c0_16, %c0_17] : memref<1x2xf32, #tpu.memory_space<vmem>>, vector<1x1xf32>
    tpu.vector_store %arg2[%c0_16, %c0_17], %48 {strides = array<i32>} : memref<1x2xf32, #tpu.memory_space<vmem>>, vector<1x1xf32>,
    %c0_18 = arith.constant 0 : index
    %c1 = arith.constant 1 : index
    %51 = vector.load %arg2[%c0_18, %c1] : memref<1x2xf32, #tpu.memory_space<vmem>>, vector<1x1xf32>
    tpu.vector_store %arg2[%c0_18, %c1], %49 {strides = array<i32>} : memref<1x2xf32, #tpu.memory_space<vmem>>, vector<1x1xf32>,
    return
  }
}

</mosaic_0001>

<llo_original>
// kernel: batch_loss.1
$region0: #{batch_loss.1}
  #allocation0 [shape = 'u32[]', space=smem, size = 0x4, offset = 0x4, fixed_abs, tag = 'smem constant byte address 0x4 - core index']
  #allocation1 [shape = 'u32[144,128]{1,0:T(1,128)}', space=vmem, size = 0x12000, scoped, tag = 'internal scratch']
  %s0 = inlined_call_operand.vmem [shape: f32[8,12], index: 0, kind: input, shape index: {}]
  %s1 = inlined_call_operand.vmem [shape: f32[8,11], index: 1, kind: input, shape index: {}]
  %s2 = inlined_call_operand.vmem [shape: f32[1,2], index: 2, kind: output, shape index: {}]
  %s3 = sld [smem:[#allocation0]]
  $region18: #{batch_loss.1} parent=0
    _
  %s5 = ssub.s32 1, %s3
  %s6 = scalar_select 0, %s5, %s3
  // Predicated region
  $region2: #{batch_loss.1} parent=0 // pred_check
    _
  $region3: #{batch_loss.1} parent=0 // pred_check_branch
    %8 = sbr.rel (0) target = $region5
  $region4: #{batch_loss.1} parent=0 // pred_region
    _
  $region5: #{batch_loss.1} parent=0 // pred_fallthru
    _
  // Predicated region
  $region6: #{batch_loss.1} parent=0 // pred_check
    _
  $region7: #{batch_loss.1} parent=0 // pred_check_branch
    %10 = sbr.rel (0) target = $region9
  $region8: #{batch_loss.1} parent=0 // pred_region
    _
  $region9: #{batch_loss.1} parent=0 // pred_fallthru
    _
  %v11 = vld [vmem:[%s0] sm:$0xff]
  %v12 = vld [vmem:[%s1] sm:$0xff]
  %14 = vrot.lane.b32.xlu0 %v12, 1
  %v15 = vpop.permute.xlu0 %14
  %v17 = vmul.f32 %v11, %v15
  %19 = vrot.lane.b32.xlu0 %v17, 127
  %v20 = vpop.permute.xlu0 %19
  %vm22 = vcmask 89088
  %v23 = vsel %vm22, %v20, 0.0
  %24 = vadd.xlane.f32.xlu0 %v23
  %v25 = vpop.xlane.xlu0 %24
  %v26 = vadd.f32 %v11, %v25
  %v27 = vmin.f32 %v11, 0.0
  %v28 = vmin.f32 %v17, 0.0
  %30 = vrot.lane.b32.xlu0 %v28, 127
  %v31 = vpop.permute.xlu0 %30
  %v33 = vsel %vm22, %v31, 0.0
  %34 = vadd.xlane.f32.xlu0 %v33
  %v35 = vpop.xlane.xlu0 %34
  %v36 = vadd.f32 %v27, %v35
  %v37 = vmul.f32 %v36, 8e-05
  %v38 = vrcp.pop %v26
  %v39 = vmul.f32 1.0, %v38
  %v40 = vmul.f32 %v11, %v39
  %42 = vset.pattern.permute.xlu0 0
  %43 = vperm.xlu0 %42, %v39
  %v44 = vpop.permute.xlu0 %43
  %v46 = vmul.f32 %v17, %v44
  %v47 = vrot.slane %v40, 7
  %49 = vrot.lane.b32.xlu0 %v46, 127
  %v50 = vpop.permute.xlu0 %49
  %v52 = vrot.slane %v50, 7
  %v53 = vsub.f32 %v47, %v11
  %v54 = vand.u32 2147483647, %v53
  %56 = vrot.lane.b32.xlu0 %v11, 127
  %v57 = vpop.permute.xlu0 %56
  %v59 = vsub.f32 %v52, %v57
  %v60 = vand.u32 2147483647, %v59
  %v61 = vsel %vm22, %v60, 0.0
  %62 = vadd.xlane.f32.xlu0 %v61
  %v63 = vpop.xlane.xlu0 %62
  %v64 = vadd.f32 %v54, %v63
  %v65 = vlaneseq
  %v66 = vshrl.u32 %v65, 7
  %vm67 = vcmp.eq.s32.totalorder %v66, 0
  %v68 = vmul.f32 %v64, 0.0025
  %v69 = vsub.f32 1.0, %v68
  %v70 = vsel %vm67, 1.0, %v69
  %v71 = vmul.f32 %v26, %v70
  %v72 = vadd.f32 %v71, %v37
  %v73 = vlog2.pop %v72
  %v74 = vmul.f32 %v73, 0.6931472
  %vm75 = vcmask 7168
  %v76 = vsel %vm75, %v74, 0.0
  %v77 = vrot.slane %v76, 4
  %v78 = vadd.f32 %v76, %v77
  %v79 = vrot.slane %v78, 2
  %v80 = vadd.f32 %v78, %v79
  %v81 = vrot.slane %v80, 1
  %v82 = vadd.f32 %v80, %v81
  %v83 = vsub.f32 0.0, %v82
  %v84 = vmul.f32 %v83, 0.125
  %v85 = vmul.f32 %v82, 1.442695
  %v86 = vpow.pop %v85
  %vm87 = vcmask 0
  %88 = vst.msk [vmem:[%s2] sm:$0x1] %vm87, %v84
  %90 = vrot.lane.b32.xlu0 %v86, 1
  %v91 = vpop.permute.xlu0 %90
  %vm93 = vcmask 8200
  %94 = vst.msk [vmem:[%s2] sm:$0x1] %vm93, %v91
  // Predicated region
  $region10: #{batch_loss.1} parent=0 // pred_check
    _
  $region11: #{batch_loss.1} parent=0 // pred_check_branch
    %96 = sbr.rel (0) target = $region13
  $region12: #{batch_loss.1} parent=0 // pred_region
    _
  $region13: #{batch_loss.1} parent=0 // pred_fallthru
    _
  // Predicated region
  $region14: #{batch_loss.1} parent=0 // pred_check
    _
  $region15: #{batch_loss.1} parent=0 // pred_check_branch
    %98 = sbr.rel (0) target = $region17
  $region16: #{batch_loss.1} parent=0 // pred_region
    _
  $region17: #{batch_loss.1} parent=0 // pred_fallthru
    _

</llo_original>
